<compile_context>
chip_gen: v5e
topology: v5e:2x2
jax: 0.10.0
libtpu: 0.0.40
codegen_flags: <defaults>
</compile_context>

<pallas_src>
import math

import jax
import jax.numpy as jnp
from jax.experimental import pallas as pl
from jax.experimental.pallas import tpu as pltpu


def _round_up(x, m):
    return ((x + m - 1) // m) * m


def bayesian_dense_kernel(x_ref, wmu_ref, wsig_ref, weps_ref,
                          bmu_ref, bsig_ref, beps_ref, o_ref, acc_ref):
    k = pl.program_id(2)

    @pl.when(k == 0)
    def _init():
        acc_ref[...] = jnp.zeros_like(acc_ref)

    # Reparameterized weight tile in native (out, in) layout: w = mu + exp(sigma) * eps
    w = wmu_ref[...] + jnp.exp(wsig_ref[...]) * weps_ref[...]          # (tn, tk)

    # y_tile += x_tile @ w_tile^T : contract the shared in_features (last) axis
    # of both operands directly on the MXU (no transposed weight copies).
    # TODO(synk): optionally cast x / w to bfloat16 here (keep f32 accumulation)
    # once the kernel is MXU-bound at large batch; neutral while mem-bound.
    acc_ref[...] += jax.lax.dot_general(
        x_ref[...], w,
        dimension_numbers=(((1,), (1,)), ((), ())),
        preferred_element_type=jnp.float32)

    @pl.when(k == pl.num_programs(2) - 1)
    def _finalize():
        # Bias sample + add exactly once per output tile.
        b = bmu_ref[...] + jnp.exp(bsig_ref[...]) * beps_ref[...]      # (1, tn)
        o_ref[...] = (acc_ref[...] + b).astype(o_ref.dtype)


def bayesian_dense(x, w_mu, w_sigma, b_mu, b_sigma, key, *, tm=256, tn=256, tk=512):
    """Forward pass of BayesianDense: y = x @ (mu_w + exp(sig_w)*eps_w)^T + (mu_b + exp(sig_b)*eps_b).

    x:        (B, in_features) f32
    w_mu:     (out_features, in_features) f32   (native PyTorch layout, NOT transposed)
    w_sigma:  (out_features, in_features) f32   (log-std)
    b_mu:     (out_features,) f32
    b_sigma:  (out_features,) f32
    key:      PRNG key for the Normal().rsample() noise
    returns:  (B, out_features) f32
    """
    B, IN = x.shape
    OUT = w_mu.shape[0]

    # rsample noise (matches jax.random semantics of the reference check exactly).
    k_w, k_b = jax.random.split(key)
    w_eps = jax.random.normal(k_w, w_mu.shape, dtype=jnp.float32)
    b_eps = jax.random.normal(k_b, b_mu.shape, dtype=jnp.float32)

    # Clamp tile sizes to the padded problem, keeping (8, 128) alignment and a
    # lane-dense (multiple-of-128) output tile.
    tm = min(tm, _round_up(B, 8))
    tn = min(tn, _round_up(OUT, 128))
    tk = min(tk, _round_up(IN, 128))

    Bp = _round_up(B, tm)
    OUTp = _round_up(OUT, tn)
    INp = _round_up(IN, tk)

    def pad2(a, r, c):
        return jnp.pad(a, ((0, r - a.shape[0]), (0, c - a.shape[1])))

    xp = pad2(x, Bp, INp)
    wmup = pad2(w_mu, OUTp, INp)
    wsigp = pad2(w_sigma, OUTp, INp)
    wepsp = pad2(w_eps, OUTp, INp)
    bmup = jnp.pad(b_mu, (0, OUTp - OUT)).reshape(1, OUTp)
    bsigp = jnp.pad(b_sigma, (0, OUTp - OUT)).reshape(1, OUTp)
    bepsp = jnp.pad(b_eps, (0, OUTp - OUT)).reshape(1, OUTp)

    grid = (Bp // tm, OUTp // tn, INp // tk)

    # VMEM budget: 3 double-buffered (tn, tk) weight streams + double-buffered
    # x / out tiles + accumulator + bias rows, ~2x headroom, capped for v7x.
    est_bytes = 4 * (3 * 2 * tn * tk + 2 * tm * tk + 2 * tm * tn + tm * tn + 3 * 2 * tn)
    vmem_limit = int(min(max(2 * est_bytes, 32 * 2**20), 48 * 2**20))

    out_p = pl.pallas_call(
        bayesian_dense_kernel,
        out_shape=jax.ShapeDtypeStruct((Bp, OUTp), jnp.float32),
        grid_spec=pltpu.PrefetchScalarGridSpec(
            num_scalar_prefetch=0,
            grid=grid,
            in_specs=[
                pl.BlockSpec((tm, tk), lambda i, j, k: (i, k)),   # x
                pl.BlockSpec((tn, tk), lambda i, j, k: (j, k)),   # w_mu   (out, in)
                pl.BlockSpec((tn, tk), lambda i, j, k: (j, k)),   # w_sigma(out, in)
                pl.BlockSpec((tn, tk), lambda i, j, k: (j, k)),   # w_eps  (out, in)
                pl.BlockSpec((1, tn), lambda i, j, k: (0, j)),    # b_mu
                pl.BlockSpec((1, tn), lambda i, j, k: (0, j)),    # b_sigma
                pl.BlockSpec((1, tn), lambda i, j, k: (0, j)),    # b_eps
            ],
            out_specs=pl.BlockSpec((tm, tn), lambda i, j, k: (i, j)),
            scratch_shapes=[pltpu.VMEM((tm, tn), jnp.float32)],
        ),
        compiler_params=pltpu.CompilerParams(
            dimension_semantics=("parallel", "parallel", "arbitrary"),
            vmem_limit_bytes=vmem_limit),
    )(xp, wmup, wsigp, wepsp, bmup, bsigp, bepsp)

    return out_p[:B, :OUT]


def init_params(key, in_features, out_features):
    """Mirror reset_parameters(): kaiming_normal_(fan_in) -> std = sqrt(2/fan_in);
    w_sigma = -3, b_mu = 0.1, b_sigma = -3."""
    std = math.sqrt(2.0 / in_features)
    w_mu = jax.random.normal(key, (out_features, in_features), dtype=jnp.float32) * std
    w_sigma = jnp.full((out_features, in_features), -3.0, dtype=jnp.float32)
    b_mu = jnp.full((out_features,), 0.1, dtype=jnp.float32)
    b_sigma = jnp.full((out_features,), -3.0, dtype=jnp.float32)
    return w_mu, w_sigma, b_mu, b_sigma


def bayesian_dense_reference(x, w_mu, w_sigma, b_mu, b_sigma, key):
    """Pure-JAX reference with the identical noise realization."""
    k_w, k_b = jax.random.split(key)
    w = w_mu + jnp.exp(w_sigma) * jax.random.normal(k_w, w_mu.shape, jnp.float32)
    b = b_mu + jnp.exp(b_sigma) * jax.random.normal(k_b, b_mu.shape, jnp.float32)
    return jnp.dot(x, w.T, precision=jax.lax.Precision.HIGHEST) + b


if __name__ == "__main__":
    root = jax.random.PRNGKey(0)
    k_init, k_x, k_noise, k_x2, k_noise2 = jax.random.split(root, 5)

    # Case 1: PyTorch-module-sized small problem (exercises the pad + slice path).
    B, IN, OUT = 8, 32, 16
    w_mu, w_sigma, b_mu, b_sigma = init_params(k_init, IN, OUT)
    x = jax.random.normal(k_x, (B, IN), dtype=jnp.float32)

    y = jax.block_until_ready(bayesian_dense(x, w_mu, w_sigma, b_mu, b_sigma, k_noise))
    y_ref = bayesian_dense_reference(x, w_mu, w_sigma, b_mu, b_sigma, k_noise)
    assert y.shape == (B, OUT)
    assert jnp.allclose(y, y_ref, atol=1e-3, rtol=1e-3)

    # Case 2: exercise the full (i, j, k) grid (2 x 2 x 3) with K-accumulation,
    # accumulator init/finalize and bias-added-once, using small tiles.
    B2, IN2, OUT2 = 16, 384, 256
    w_mu2, w_sigma2, b_mu2, b_sigma2 = init_params(k_init, IN2, OUT2)
    x2 = jax.random.normal(k_x2, (B2, IN2), dtype=jnp.float32)

    y2 = jax.block_until_ready(
        bayesian_dense(x2, w_mu2, w_sigma2, b_mu2, b_sigma2, k_noise2,
                       tm=8, tn=128, tk=128))
    y2_ref = bayesian_dense_reference(x2, w_mu2, w_sigma2, b_mu2, b_sigma2, k_noise2)
    assert y2.shape == (B2, OUT2)
    assert jnp.allclose(y2, y2_ref, atol=1e-3, rtol=1e-3)

    print("KERNEL_OK")
</pallas_src>

<mosaic_0001>
module attributes {stable_mosaic.version = 11 : i64} {
  func.func @bayesian_dense_kernel(%arg0: i32, %arg1: i32, %arg2: i32, %arg3: memref<8x128xf32, #tpu.memory_space<vmem>>, %arg4: memref<128x128xf32, #tpu.memory_space<vmem>>, %arg5: memref<128x128xf32, #tpu.memory_space<vmem>>, %arg6: memref<128x128xf32, #tpu.memory_space<vmem>>, %arg7: memref<1x128xf32, #tpu.memory_space<vmem>>, %arg8: memref<1x128xf32, #tpu.memory_space<vmem>>, %arg9: memref<1x128xf32, #tpu.memory_space<vmem>>, %arg10: memref<8x128xf32, #tpu.memory_space<vmem>>, %arg11: memref<8x128xf32, #tpu.memory_space<vmem>>) attributes {dimension_semantics = [#tpu.dimension_semantics<parallel>, #tpu.dimension_semantics<parallel>, #tpu.dimension_semantics<arbitrary>], iteration_bounds = array<i64: 1, 1, 1>, scalar_prefetch = 0 : i64, scratch_operands = 1 : i64, tpu.core_type = #tpu.core_type<tc>, window_params = [{transform_indices = @transform_0, window_bounds = array<i64: 8, 128>}, {transform_indices = @transform_1, window_bounds = array<i64: 128, 128>}, {transform_indices = @transform_2, window_bounds = array<i64: 128, 128>}, {transform_indices = @transform_3, window_bounds = array<i64: 128, 128>}, {transform_indices = @transform_4, window_bounds = array<i64: 1, 128>}, {transform_indices = @transform_5, window_bounds = array<i64: 1, 128>}, {transform_indices = @transform_6, window_bounds = array<i64: 1, 128>}, {transform_indices = @transform_7, window_bounds = array<i64: 8, 128>}]} {
    %c0_i32 = arith.constant 0 : i32
    %0 = arith.cmpi eq, %arg2, %c0_i32 : i32
    %1 = arith.extui %0 : i1 to i32
    %c0_i32_0 = arith.constant 0 : i32
    %2 = arith.cmpi ne, %1, %c0_i32_0 : i32
    scf.if %2 {
      %cst_14 = arith.constant 0.000000e+00 : f32
      %17 = vector.broadcast %cst_14 : f32 to vector<8x128xf32>
      %c0_15 = arith.constant 0 : index
      %c0_16 = arith.constant 0 : index
      %18 = vector.load %arg11[%c0_15, %c0_16] : memref<8x128xf32, #tpu.memory_space<vmem>>, vector<8x128xf32>
      tpu.vector_store %arg11[%c0_15, %c0_16], %17 {strides = array<i32>} : memref<8x128xf32, #tpu.memory_space<vmem>>, vector<8x128xf32>,
    } else {
    }
    %c0 = arith.constant 0 : index
    %c0_1 = arith.constant 0 : index
    %3 = vector.load %arg4[%c0, %c0_1] : memref<128x128xf32, #tpu.memory_space<vmem>>, vector<128x128xf32>
    %c0_2 = arith.constant 0 : index
    %c0_3 = arith.constant 0 : index
    %4 = vector.load %arg5[%c0_2, %c0_3] : memref<128x128xf32, #tpu.memory_space<vmem>>, vector<128x128xf32>
    %5 = math.exp %4 : vector<128x128xf32>
    %c0_4 = arith.constant 0 : index
    %c0_5 = arith.constant 0 : index
    %6 = vector.load %arg6[%c0_4, %c0_5] : memref<128x128xf32, #tpu.memory_space<vmem>>, vector<128x128xf32>
    %7 = arith.mulf %5, %6 : vector<128x128xf32>
    %8 = arith.addf %3, %7 : vector<128x128xf32>
    %c0_6 = arith.constant 0 : index
    %c0_7 = arith.constant 0 : index
    %9 = vector.load %arg11[%c0_6, %c0_7] : memref<8x128xf32, #tpu.memory_space<vmem>>, vector<8x128xf32>
    %c0_8 = arith.constant 0 : index
    %c0_9 = arith.constant 0 : index
    %10 = vector.load %arg3[%c0_8, %c0_9] : memref<8x128xf32, #tpu.memory_space<vmem>>, vector<8x128xf32>
    %cst = arith.constant dense<0.000000e+00> : vector<8x128xf32>
    %11 = tpu.matmul %10, %8, %cst {dimension_numbers = #tpu.dot_dimension_numbers<[1], [1], [0], [0], [0, 0, 1, 0], [], []>} : vector<8x128xf32>, vector<128x128xf32>, vector<8x128xf32> -> vector<8x128xf32>
    %12 = arith.addf %9, %11 : vector<8x128xf32>
    %c0_10 = arith.constant 0 : index
    %c0_11 = arith.constant 0 : index
    %13 = vector.load %arg11[%c0_10, %c0_11] : memref<8x128xf32, #tpu.memory_space<vmem>>, vector<8x128xf32>
    tpu.vector_store %arg11[%c0_10, %c0_11], %12 {strides = array<i32>} : memref<8x128xf32, #tpu.memory_space<vmem>>, vector<8x128xf32>,
    %c0_i32_12 = arith.constant 0 : i32
    %14 = arith.cmpi eq, %arg2, %c0_i32_12 : i32
    %15 = arith.extui %14 : i1 to i32
    %c0_i32_13 = arith.constant 0 : i32
    %16 = arith.cmpi ne, %15, %c0_i32_13 : i32
    scf.if %16 {
      %c0_14 = arith.constant 0 : index
      %c0_15 = arith.constant 0 : index
      %17 = vector.load %arg7[%c0_14, %c0_15] : memref<1x128xf32, #tpu.memory_space<vmem>>, vector<1x128xf32>
      %c0_16 = arith.constant 0 : index
      %c0_17 = arith.constant 0 : index
      %18 = vector.load %arg8[%c0_16, %c0_17] : memref<1x128xf32, #tpu.memory_space<vmem>>, vector<1x128xf32>
      %19 = math.exp %18 : vector<1x128xf32>
      %c0_18 = arith.constant 0 : index
      %c0_19 = arith.constant 0 : index
      %20 = vector.load %arg9[%c0_18, %c0_19] : memref<1x128xf32, #tpu.memory_space<vmem>>, vector<1x128xf32>
      %21 = arith.mulf %19, %20 : vector<1x128xf32>
      %22 = arith.addf %17, %21 : vector<1x128xf32>
      %c0_20 = arith.constant 0 : index
      %c0_21 = arith.constant 0 : index
      %23 = vector.load %arg11[%c0_20, %c0_21] : memref<8x128xf32, #tpu.memory_space<vmem>>, vector<8x128xf32>
      %24 = vector.broadcast %22 : vector<1x128xf32> to vector<8x128xf32>
      %25 = arith.addf %23, %24 : vector<8x128xf32>
      %c0_22 = arith.constant 0 : index
      %c0_23 = arith.constant 0 : index
      %26 = vector.load %arg10[%c0_22, %c0_23] : memref<8x128xf32, #tpu.memory_space<vmem>>, vector<8x128xf32>
      tpu.vector_store %arg10[%c0_22, %c0_23], %25 {strides = array<i32>} : memref<8x128xf32, #tpu.memory_space<vmem>>, vector<8x128xf32>,
    } else {
    }
    return
  }
  func.func @transform_0(%arg0: i32, %arg1: i32, %arg2: i32) -> (i32, i32) {
    %c0_i32 = arith.constant 0 : i32
    return %arg0, %arg2 : i32, i32
  }
  func.func @transform_1(%arg0: i32, %arg1: i32, %arg2: i32) -> (i32, i32) {
    %c0_i32 = arith.constant 0 : i32
    return %arg1, %arg2 : i32, i32
  }
  func.func @transform_2(%arg0: i32, %arg1: i32, %arg2: i32) -> (i32, i32) {
    %c0_i32 = arith.constant 0 : i32
    return %arg1, %arg2 : i32, i32
  }
  func.func @transform_3(%arg0: i32, %arg1: i32, %arg2: i32) -> (i32, i32) {
    %c0_i32 = arith.constant 0 : i32
    return %arg1, %arg2 : i32, i32
  }
  func.func @transform_4(%arg0: i32, %arg1: i32, %arg2: i32) -> (i32, i32) {
    %c0_i32 = arith.constant 0 : i32
    %c0_i32_0 = arith.constant 0 : i32
    return %c0_i32, %arg1 : i32, i32
  }
  func.func @transform_5(%arg0: i32, %arg1: i32, %arg2: i32) -> (i32, i32) {
    %c0_i32 = arith.constant 0 : i32
    %c0_i32_0 = arith.constant 0 : i32
    return %c0_i32, %arg1 : i32, i32
  }
  func.func @transform_6(%arg0: i32, %arg1: i32, %arg2: i32) -> (i32, i32) {
    %c0_i32 = arith.constant 0 : i32
    %c0_i32_0 = arith.constant 0 : i32
    return %c0_i32, %arg1 : i32, i32
  }
  func.func @transform_7(%arg0: i32, %arg1: i32, %arg2: i32) -> (i32, i32) {
    %c0_i32 = arith.constant 0 : i32
    return %arg0, %arg1 : i32, i32
  }
}

</mosaic_0001>

<llo_original>
// kernel: tpu_custom_call.1
$region0: #{tpu_custom_call.1}
  #allocation0 [shape = 'u32[]', space=smem, size = 0x4, offset = 0x4, fixed_abs, tag = 'smem constant byte address 0x4 - core index']
  #allocation1 [shape = 'u32[72,128]{1,0:T(1,128)}', space=vmem, size = 0x9000, scoped, tag = 'internal scratch']
  #allocation2 [shape = 'f32[8,128]{1,0:T(8,128)}', space=vmem, size = 0x1000, scoped, tag = 'scratch operand']
  %s0 = inlined_call_operand.hbm [shape: f32[8,128], index: 0, kind: input, shape index: {}]
  %s1 = inlined_call_operand.hbm [shape: f32[128,128], index: 1, kind: input, shape index: {}]
  %s2 = inlined_call_operand.hbm [shape: f32[128,128], index: 2, kind: input, shape index: {}]
  %s3 = inlined_call_operand.hbm [shape: f32[128,128], index: 3, kind: input, shape index: {}]
  %s4 = inlined_call_operand.vmem [shape: f32[1,128], index: 4, kind: input, shape index: {}]
  %s5 = inlined_call_operand.vmem [shape: f32[1,128], index: 5, kind: input, shape index: {}]
  %s6 = inlined_call_operand.vmem [shape: f32[1,128], index: 6, kind: input, shape index: {}]
  %s7 = inlined_call_operand.hbm [shape: f32[8,128], index: 7, kind: output, shape index: {}]
  %s8 = sld [smem:[#allocation0]]
  $region62: #{tpu_custom_call.1} parent=0
    _
  %s10 = ssub.s32 1, %s8
  %s11 = scalar_select 0, %s10, %s8
  $region1: #{tpu_custom_call.1} parent=0
    #allocation3 [shape = 'u8[4096]{0}', space=vmem, size = 0x1000, scoped, tag = 'input window, operand 0, single buffered']
    #allocation4 [shape = 's32[1]{0}', space=sflag, size = 0x4, scoped, tag = 'scoped memory for tpu_custom_call.1']
    #allocation5 [shape = 's32[1]{0}', space=sflag, size = 0x4, scoped, tag = 'scoped memory for tpu_custom_call.1']
    #allocation6 [shape = 'u8[65536]{0}', space=vmem, size = 0x10000, scoped, tag = 'input window, operand 1, single buffered']
    #allocation7 [shape = 's32[1]{0}', space=sflag, size = 0x4, scoped, tag = 'scoped memory for tpu_custom_call.1']
    #allocation8 [shape = 'u8[65536]{0}', space=vmem, size = 0x10000, scoped, tag = 'input window, operand 2, single buffered']
    #allocation9 [shape = 'u8[65536]{0}', space=vmem, size = 0x10000, scoped, tag = 'input window, operand 3, single buffered']
    #allocation10 [shape = 's32[1]{0}', space=sflag, size = 0x4, scoped, tag = 'scoped memory for tpu_custom_call.1']
    #allocation11 [shape = 'u8[4096]{0}', space=vmem, size = 0x1000, scoped, tag = 'output window, operand 0, single buffered']
    %12 = vsyncpa [#allocation4], 0
    %13 = vsyncpa [#allocation7], 0
    %14 = vsyncpa [#allocation10], 0
    %15 = vsyncpa [#allocation5], 0
    // Predicated region
    $region2: #{tpu_custom_call.1} parent=1 // pred_check
      _
    $region3: #{tpu_custom_call.1} parent=1 // pred_check_branch
      %17 = sbr.rel (0) target = $region5
    $region4: #{tpu_custom_call.1} parent=1 // pred_region
      %19 = vsyncadd [#allocation4], 0
      %s21 = sshll.u32 %s0, 4
      %s22 = int_to_ptr.hbm [resolvable:$true] %s21
      %s23 = sshll.u32 [#allocation3], 4
      %s24 = int_to_ptr.vmem [resolvable:$true] %s23
      %26 = dma.hbm_to_vmem [thread:$0]  %s22, 128, %s24, [#allocation4]
    $region5: #{tpu_custom_call.1} parent=1 // pred_fallthru
      _
    // Predicated region
    $region6: #{tpu_custom_call.1} parent=1 // pred_check
      _
    $region7: #{tpu_custom_call.1} parent=1 // pred_check_branch
      %28 = sbr.rel (0) target = $region9
    $region8: #{tpu_custom_call.1} parent=1 // pred_region
      %30 = vsyncadd [#allocation7], 0
      %s31 = sshll.u32 %s1, 4
      %s32 = int_to_ptr.hbm [resolvable:$true] %s31
      %s33 = sshll.u32 [#allocation6], 4
      %s34 = int_to_ptr.vmem [resolvable:$true] %s33
      %39 = dma.hbm_to_vmem [thread:$0]  %s32, 2048, %s34, [#allocation7], 128, 128, 8
    $region9: #{tpu_custom_call.1} parent=1 // pred_fallthru
      _
    // Predicated region
    $region10: #{tpu_custom_call.1} parent=1 // pred_check
      _
    $region11: #{tpu_custom_call.1} parent=1 // pred_check_branch
      %41 = sbr.rel (0) target = $region13
    $region12: #{tpu_custom_call.1} parent=1 // pred_region
      %43 = vsyncadd [#allocation7], 0
      %s44 = sshll.u32 %s2, 4
      %s45 = int_to_ptr.hbm [resolvable:$true] %s44
      %s46 = sshll.u32 [#allocation8], 4
      %s47 = int_to_ptr.vmem [resolvable:$true] %s46
      %52 = dma.hbm_to_vmem [thread:$0]  %s45, 2048, %s47, [#allocation7], 128, 128, 8
    $region13: #{tpu_custom_call.1} parent=1 // pred_fallthru
      _
    // Predicated region
    $region14: #{tpu_custom_call.1} parent=1 // pred_check
      _
    $region15: #{tpu_custom_call.1} parent=1 // pred_check_branch
      %54 = sbr.rel (0) target = $region17
    $region16: #{tpu_custom_call.1} parent=1 // pred_region
      %56 = vsyncadd [#allocation10], 0
      %s57 = sshll.u32 %s3, 4
      %s58 = int_to_ptr.hbm [resolvable:$true] %s57
      %s59 = sshll.u32 [#allocation9], 4
      %s60 = int_to_ptr.vmem [resolvable:$true] %s59
      %65 = dma.hbm_to_vmem [thread:$0]  %s58, 2048, %s60, [#allocation10], 128, 128, 8
    $region17: #{tpu_custom_call.1} parent=1 // pred_fallthru
      _
    // Predicated region
    $region18: #{tpu_custom_call.1} parent=1 // pred_check
      _
    $region19: #{tpu_custom_call.1} parent=1 // pred_check_branch
      %67 = sbr.rel (0) target = $region21
    $region20: #{tpu_custom_call.1} parent=1 // pred_region
      _
    $region21: #{tpu_custom_call.1} parent=1 // pred_fallthru
      _
    // Predicated region
    $region22: #{tpu_custom_call.1} parent=1 // pred_check
      _
    $region23: #{tpu_custom_call.1} parent=1 // pred_check_branch
      %69 = sbr.rel (0) target = $region25
    $region24: #{tpu_custom_call.1} parent=1 // pred_region
      _
    $region25: #{tpu_custom_call.1} parent=1 // pred_fallthru
      _
    // Predicated region
    $region26: #{tpu_custom_call.1} parent=1 // pred_check
      _
    $region27: #{tpu_custom_call.1} parent=1 // pred_check_branch
      %71 = sbr.rel (0) target = $region29
    $region28: #{tpu_custom_call.1} parent=1 // pred_region
      _
    $region29: #{tpu_custom_call.1} parent=1 // pred_fallthru
      _
    // Predicated region
    $region30: #{tpu_custom_call.1} parent=1 // pred_check
      _
    $region31: #{tpu_custom_call.1} parent=1 // pred_check_branch
      %73 = sbr.rel (0) target = $region33
    $region32: #{tpu_custom_call.1} parent=1 // pred_region
      %75 = dma.done [#allocation4], 128
    $region33: #{tpu_custom_call.1} parent=1 // pred_fallthru
      _
    // Predicated region
    $region34: #{tpu_custom_call.1} parent=1 // pred_check
      _
    $region35: #{tpu_custom_call.1} parent=1 // pred_check_branch
      %77 = sbr.rel (0) target = $region37
    $region36: #{tpu_custom_call.1} parent=1 // pred_region
      %79 = dma.done [#allocation7], 2048
    $region37: #{tpu_custom_call.1} parent=1 // pred_fallthru
      _
    // Predicated region
    $region38: #{tpu_custom_call.1} parent=1 // pred_check
      _
    $region39: #{tpu_custom_call.1} parent=1 // pred_check_branch
      %81 = sbr.rel (0) target = $region41
    $region40: #{tpu_custom_call.1} parent=1 // pred_region
      %83 = dma.done [#allocation7], 2048
    $region41: #{tpu_custom_call.1} parent=1 // pred_fallthru
      _
    // Predicated region
    $region42: #{tpu_custom_call.1} parent=1 // pred_check
      _
    $region43: #{tpu_custom_call.1} parent=1 // pred_check_branch
      %85 = sbr.rel (0) target = $region45
    $region44: #{tpu_custom_call.1} parent=1 // pred_region
      %87 = dma.done [#allocation10], 2048
    $region45: #{tpu_custom_call.1} parent=1 // pred_fallthru
      _
    %p88 = scmp.eq.s32.totalorder 0, 0
    // Predicated region
    $region46: #{tpu_custom_call.1} parent=1 // pred_check
      %p89 = pneg %p88
    $region47: #{tpu_custom_call.1} parent=1 // pred_check_branch
      %91 = sbr.rel (%p89) target = $region49
    $region48: #{tpu_custom_call.1} parent=1 // pred_region
      %92 = vst [vmem:[#allocation2] sm:$0xff] 0.0
    $region49: #{tpu_custom_call.1} parent=1 // pred_fallthru
      _
    %v93 = vld [vmem:[#allocation6] sm:$0xff]
    %v94 = vld [vmem:[#allocation6 + $0x8] sm:$0xff]
    %v95 = vld [vmem:[#allocation6 + $0x10] sm:$0xff]
    %v96 = vld [vmem:[#allocation6 + $0x18] sm:$0xff]
    %v97 = vld [vmem:[#allocation6 + $0x20] sm:$0xff]
    %v98 = vld [vmem:[#allocation6 + $0x28] sm:$0xff]
    %v99 = vld [vmem:[#allocation6 + $0x30] sm:$0xff]
    %v100 = vld [vmem:[#allocation6 + $0x38] sm:$0xff]
    %v101 = vld [vmem:[#allocation6 + $0x40] sm:$0xff]
    %v102 = vld [vmem:[#allocation6 + $0x48] sm:$0xff]
    %v103 = vld [vmem:[#allocation6 + $0x50] sm:$0xff]
    %v104 = vld [vmem:[#allocation6 + $0x58] sm:$0xff]
    %v105 = vld [vmem:[#allocation6 + $0x60] sm:$0xff]
    %v106 = vld [vmem:[#allocation6 + $0x68] sm:$0xff]
    %v107 = vld [vmem:[#allocation6 + $0x70] sm:$0xff]
    %v108 = vld [vmem:[#allocation6 + $0x78] sm:$0xff]
    %v109 = vld [vmem:[#allocation8] sm:$0xff]
    %v110 = vld [vmem:[#allocation8 + $0x8] sm:$0xff]
    %v111 = vld [vmem:[#allocation8 + $0x10] sm:$0xff]
    %v112 = vld [vmem:[#allocation8 + $0x18] sm:$0xff]
    %v113 = vld [vmem:[#allocation8 + $0x20] sm:$0xff]
    %v114 = vld [vmem:[#allocation8 + $0x28] sm:$0xff]
    %v115 = vld [vmem:[#allocation8 + $0x30] sm:$0xff]
    %v116 = vld [vmem:[#allocation8 + $0x38] sm:$0xff]
    %v117 = vld [vmem:[#allocation8 + $0x40] sm:$0xff]
    %v118 = vld [vmem:[#allocation8 + $0x48] sm:$0xff]
    %v119 = vld [vmem:[#allocation8 + $0x50] sm:$0xff]
    %v120 = vld [vmem:[#allocation8 + $0x58] sm:$0xff]
    %v121 = vld [vmem:[#allocation8 + $0x60] sm:$0xff]
    %v122 = vld [vmem:[#allocation8 + $0x68] sm:$0xff]
    %v123 = vld [vmem:[#allocation8 + $0x70] sm:$0xff]
    %v124 = vld [vmem:[#allocation8 + $0x78] sm:$0xff]
    %v125 = vmul.f32 %v109, 1.442695
    %v126 = vpow.pop %v125
    %v127 = vmul.f32 %v110, 1.442695
    %v128 = vpow.pop %v127
    %v129 = vmul.f32 %v111, 1.442695
    %v130 = vpow.pop %v129
    %v131 = vmul.f32 %v112, 1.442695
    %v132 = vpow.pop %v131
    %v133 = vmul.f32 %v113, 1.442695
    %v134 = vpow.pop %v133
    %v135 = vmul.f32 %v114, 1.442695
    %v136 = vpow.pop %v135
    %v137 = vmul.f32 %v115, 1.442695
    %v138 = vpow.pop %v137
    %v139 = vmul.f32 %v116, 1.442695
    %v140 = vpow.pop %v139
    %v141 = vmul.f32 %v117, 1.442695
    %v142 = vpow.pop %v141
    %v143 = vmul.f32 %v118, 1.442695
    %v144 = vpow.pop %v143
    %v145 = vmul.f32 %v119, 1.442695
    %v146 = vpow.pop %v145
    %v147 = vmul.f32 %v120, 1.442695
    %v148 = vpow.pop %v147
    %v149 = vmul.f32 %v121, 1.442695
    %v150 = vpow.pop %v149
    %v151 = vmul.f32 %v122, 1.442695
    %v152 = vpow.pop %v151
    %v153 = vmul.f32 %v123, 1.442695
    %v154 = vpow.pop %v153
    %v155 = vmul.f32 %v124, 1.442695
    %v156 = vpow.pop %v155
    %v157 = vld [vmem:[#allocation9] sm:$0xff]
    %v158 = vld [vmem:[#allocation9 + $0x8] sm:$0xff]
    %v159 = vld [vmem:[#allocation9 + $0x10] sm:$0xff]
    %v160 = vld [vmem:[#allocation9 + $0x18] sm:$0xff]
    %v161 = vld [vmem:[#allocation9 + $0x20] sm:$0xff]
    %v162 = vld [vmem:[#allocation9 + $0x28] sm:$0xff]
    %v163 = vld [vmem:[#allocation9 + $0x30] sm:$0xff]
    %v164 = vld [vmem:[#allocation9 + $0x38] sm:$0xff]
    %v165 = vld [vmem:[#allocation9 + $0x40] sm:$0xff]
    %v166 = vld [vmem:[#allocation9 + $0x48] sm:$0xff]
    %v167 = vld [vmem:[#allocation9 + $0x50] sm:$0xff]
    %v168 = vld [vmem:[#allocation9 + $0x58] sm:$0xff]
    %v169 = vld [vmem:[#allocation9 + $0x60] sm:$0xff]
    %v170 = vld [vmem:[#allocation9 + $0x68] sm:$0xff]
    %v171 = vld [vmem:[#allocation9 + $0x70] sm:$0xff]
    %v172 = vld [vmem:[#allocation9 + $0x78] sm:$0xff]
    %v173 = vmul.f32 %v126, %v157
    %v174 = vmul.f32 %v128, %v158
    %v175 = vmul.f32 %v130, %v159
    %v176 = vmul.f32 %v132, %v160
    %v177 = vmul.f32 %v134, %v161
    %v178 = vmul.f32 %v136, %v162
    %v179 = vmul.f32 %v138, %v163
    %v180 = vmul.f32 %v140, %v164
    %v181 = vmul.f32 %v142, %v165
    %v182 = vmul.f32 %v144, %v166
    %v183 = vmul.f32 %v146, %v167
    %v184 = vmul.f32 %v148, %v168
    %v185 = vmul.f32 %v150, %v169
    %v186 = vmul.f32 %v152, %v170
    %v187 = vmul.f32 %v154, %v171
    %v188 = vmul.f32 %v156, %v172
    %v189 = vadd.f32 %v93, %v173
    %v190 = vadd.f32 %v94, %v174
    %v191 = vadd.f32 %v95, %v175
    %v192 = vadd.f32 %v96, %v176
    %v193 = vadd.f32 %v97, %v177
    %v194 = vadd.f32 %v98, %v178
    %v195 = vadd.f32 %v99, %v179
    %v196 = vadd.f32 %v100, %v180
    %v197 = vadd.f32 %v101, %v181
    %v198 = vadd.f32 %v102, %v182
    %v199 = vadd.f32 %v103, %v183
    %v200 = vadd.f32 %v104, %v184
    %v201 = vadd.f32 %v105, %v185
    %v202 = vadd.f32 %v106, %v186
    %v203 = vadd.f32 %v107, %v187
    %v204 = vadd.f32 %v108, %v188
    %v205 = vld [vmem:[#allocation2] sm:$0xff]
    %v206 = vld [vmem:[#allocation3] sm:$0xff]
    %207 = vmatpush.xpose.msra.mxu0 %v204
    %208 = vmatpush.xpose.msra.mxu0 %v203
    %209 = vmatpush.xpose.msra.mxu0 %v202
    %210 = vmatpush.xpose.msra.mxu0 %v201
    %211 = vmatpush.xpose.msra.mxu0 %v200
    %212 = vmatpush.xpose.msra.mxu0 %v199
    %213 = vmatpush.xpose.msra.mxu0 %v198
    %214 = vmatpush.xpose.msra.mxu0 %v197
    %215 = vmatpush.xpose.msra.mxu0 %v196
    %216 = vmatpush.xpose.msra.mxu0 %v195
    %217 = vmatpush.xpose.msra.mxu0 %v194
    %218 = vmatpush.xpose.msra.mxu0 %v193
    %219 = vmatpush.xpose.msra.mxu0 %v192
    %220 = vmatpush.xpose.msra.mxu0 %v191
    %221 = vmatpush.xpose.msra.mxu0 %v190
    %222 = vmatpush.xpose.msra.mxu0 %v189
    %223 = vmatmul.f32.gmra.mxu0 %v206
    %v224 = vpop.f32.mrf.mxu0
    %v225 = vadd.f32 0.0, %v224
    %226 = vdwg.mxu0
    %v227 = vadd.f32 %v205, %v225
    %228 = vst [vmem:[#allocation2] sm:$0xff] %v227
    // Predicated region
    $region50: #{tpu_custom_call.1} parent=1 // pred_check
      %p229 = pneg %p88
    $region51: #{tpu_custom_call.1} parent=1 // pred_check_branch
      %231 = sbr.rel (%p229) target = $region53
    $region52: #{tpu_custom_call.1} parent=1 // pred_region
      %v232 = vld [vmem:[%s4] sm:$0x1]
      %v233 = vld [vmem:[%s5] sm:$0x1]
      %v234 = vmul.f32 %v233, 1.442695
      %v235 = vpow.pop %v234
      %v236 = vld [vmem:[%s6] sm:$0x1]
      %v237 = vmul.f32 %v235, %v236
      %v238 = vadd.f32 %v232, %v237
      %v239 = vld [vmem:[#allocation2] sm:$0xff]
      %v241 = vperm.slane %v238, 0
      %v243 = vadd.f32 %v239, %v241
      %244 = vst [vmem:[#allocation11] sm:$0xff] %v243
    $region53: #{tpu_custom_call.1} parent=1 // pred_fallthru
      _
    // Predicated region
    $region54: #{tpu_custom_call.1} parent=1 // pred_check
      _
    $region55: #{tpu_custom_call.1} parent=1 // pred_check_branch
      %246 = sbr.rel (0) target = $region57
    $region56: #{tpu_custom_call.1} parent=1 // pred_region
      %248 = vsyncadd [#allocation5], 0
      %s250 = sshll.u32 [#allocation11], 4
      %s251 = int_to_ptr.vmem [resolvable:$true] %s250
      %s252 = sshll.u32 %s7, 4
      %s253 = int_to_ptr.hbm [resolvable:$true] %s252
      %255 = dma.vmem_to_hbm [thread:$0]  %s251, 128, %s253, [#allocation5]
    $region57: #{tpu_custom_call.1} parent=1 // pred_fallthru
      _
    // Predicated region
    $region58: #{tpu_custom_call.1} parent=1 // pred_check
      _
    $region59: #{tpu_custom_call.1} parent=1 // pred_check_branch
      %257 = sbr.rel (0) target = $region61
    $region60: #{tpu_custom_call.1} parent=1 // pred_region
      %259 = dma.done [#allocation5], 128
    $region61: #{tpu_custom_call.1} parent=1 // pred_fallthru
      _
    %260 = vsyncpa [#allocation4], 1
    %261 = vsyncpa [#allocation7], 1
    %262 = vsyncpa [#allocation10], 1
    %263 = vsyncpa [#allocation5], 1

</llo_original>
